<compile_context>
chip_gen: v5e
topology: v5e:2x2
jax: 0.10.0
libtpu: 0.0.40
codegen_flags: <defaults>
</compile_context>

<pallas_src>
import jax
import jax.numpy as jnp
from jax.experimental import pallas as pl
from jax.experimental.pallas import tpu as pltpu

MAXPAD = 4                 # largest dilation among the three convs
DILATIONS = (1, 2, 4)


def _dblock_kernel(x_ref, w_ref, b_ref, o_ref, pad_ref):
    # x_ref / o_ref : (1, H, W*C)   lane-folded activations for one batch element
    # w_ref         : (9, W*C, W*C) folded weights, index = conv_idx * 3 + ky
    # b_ref         : (3, W*C)      folded biases, one row per conv
    # pad_ref       : VMEM scratch (H + 2*MAXPAD, W*C) f32
    _, H, WC = o_ref.shape

    # Zero only the halo rows; the interior is fully rewritten before every conv.
    pad_ref[:MAXPAD, :] = jnp.zeros((MAXPAD, WC), jnp.float32)
    pad_ref[MAXPAD + H:, :] = jnp.zeros((MAXPAD, WC), jnp.float32)

    x = x_ref[0]                       # (H, WC) f32
    acc = x                            # residual: out = x + d1 + d2 + d3
    cur = x
    for n, d in enumerate(DILATIONS):
        pad_ref[MAXPAD:MAXPAD + H, :] = cur
        y = jnp.zeros((H, WC), jnp.float32)
        for ky in range(3):            # vertical taps: static row-shifted slices
            dy = (ky - 1) * d
            rows = pad_ref[MAXPAD + dy:MAXPAD + dy + H, :]
            y += jnp.dot(rows, w_ref[n * 3 + ky],
                         preferred_element_type=jnp.float32)
        y = jnp.maximum(y + b_ref[n:n + 1, :], 0.0)
        acc = acc + y
        cur = y
    o_ref[0] = acc


def _fold_conv_weight(w_hwio, d, width):
    """(3, 3, C, C) HWIO weight -> (3, W*C, W*C).

    One banded block matrix per kernel row ky that applies all three kx taps
    (and the horizontal zero 'same' padding) of a dilation-d conv in the
    lane-folded (H, W*C) layout.
    """
    C = w_hwio.shape[-1]
    mats = []
    for ky in range(3):
        m = jnp.zeros((width * C, width * C), jnp.float32)
        for kx in range(3):
            dx = (kx - 1) * d
            # sel[wi, wo] = 1 iff wi == wo + dx  (out-of-range taps -> no block)
            sel = jnp.eye(width, k=-dx, dtype=jnp.float32)
            m = m + jnp.kron(sel, w_hwio[ky, kx].astype(jnp.float32))
        mats.append(m)
    return jnp.stack(mats)             # (3, W*C, W*C)


def dblock_pallas(x_nchw, w1, w2, w3, b1, b2, b3):
    """x_nchw: (B, C, H, W). wN: (3, 3, C, C) HWIO. bN: (C,). Returns NCHW."""
    B, C, H, W = x_nchw.shape
    WC = W * C

    # NCHW -> NHWC -> lane-fold (W, C): (B, H, W*C)
    x = jnp.transpose(x_nchw, (0, 2, 3, 1)).astype(jnp.float32).reshape(B, H, WC)

    wbig = jnp.concatenate(
        [_fold_conv_weight(w, d, W) for w, d in zip((w1, w2, w3), DILATIONS)],
        axis=0)                                          # (9, WC, WC)
    bias = jnp.stack(
        [jnp.tile(b.astype(jnp.float32), W) for b in (b1, b2, b3)])  # (3, WC)

    out = pl.pallas_call(
        _dblock_kernel,
        out_shape=jax.ShapeDtypeStruct((B, H, WC), jnp.float32),
        grid_spec=pltpu.PrefetchScalarGridSpec(
            num_scalar_prefetch=0,
            grid=(B,),
            in_specs=[
                pl.BlockSpec((1, H, WC), lambda b: (b, 0, 0)),
                pl.BlockSpec((9, WC, WC), lambda b: (0, 0, 0)),
                pl.BlockSpec((3, WC), lambda b: (0, 0)),
            ],
            out_specs=pl.BlockSpec((1, H, WC), lambda b: (b, 0, 0)),
            scratch_shapes=[pltpu.VMEM((H + 2 * MAXPAD, WC), jnp.float32)],
        ),
        compiler_params=pltpu.CompilerParams(
            dimension_semantics=("parallel",)),
    )(x, wbig, bias)

    # Unfold lanes and return NCHW to match the PyTorch module.
    return jnp.transpose(out.reshape(B, H, W, C), (0, 3, 1, 2))


def dblock_reference(x_nchw, w1, w2, w3, b1, b2, b3):
    """Pure-JAX reference mirroring the PyTorch forward (NCHW in/out)."""
    x = jnp.transpose(x_nchw, (0, 2, 3, 1)).astype(jnp.float32)

    def conv_relu(inp, w, b, d):
        y = jax.lax.conv_general_dilated(
            inp, w, window_strides=(1, 1), padding=((d, d), (d, d)),
            rhs_dilation=(d, d),
            dimension_numbers=("NHWC", "HWIO", "NHWC"))
        return jax.nn.relu(y + b[None, None, None, :])

    d1 = conv_relu(x, w1, b1, 1)
    d2 = conv_relu(d1, w2, b2, 2)
    d3 = conv_relu(d2, w3, b3, 4)
    return jnp.transpose(x + d1 + d2 + d3, (0, 3, 1, 2))


if __name__ == "__main__":
    B, C, H, W = 2, 8, 16, 16          # W * C = 128 -> exactly lane-dense
    key = jax.random.PRNGKey(0)
    k0, k1, k2, k3 = jax.random.split(key, 4)

    x = jax.random.normal(k0, (B, C, H, W), jnp.float32)   # NCHW like PyTorch
    # Deterministic weight init (HWIO). Biases zeroed, matching m.bias.data.zero_().
    w1 = jax.random.normal(k1, (3, 3, C, C), jnp.float32) * 0.1
    w2 = jax.random.normal(k2, (3, 3, C, C), jnp.float32) * 0.1
    w3 = jax.random.normal(k3, (3, 3, C, C), jnp.float32) * 0.1
    b1 = jnp.zeros((C,), jnp.float32)
    b2 = jnp.zeros((C,), jnp.float32)
    b3 = jnp.zeros((C,), jnp.float32)

    out = dblock_pallas(x, w1, w2, w3, b1, b2, b3)
    out = jax.block_until_ready(out)

    ref = dblock_reference(x, w1, w2, w3, b1, b2, b3)
    assert out.shape == (B, C, H, W)
    assert jnp.allclose(out, ref, atol=1e-4, rtol=1e-4), "mismatch vs reference"

    print("KERNEL_OK")
</pallas_src>

<mosaic_0001>
module attributes {stable_mosaic.version = 11 : i64} {
  func.func @_dblock_kernel(%arg0: i32, %arg1: memref<1x16x128xf32, #tpu.memory_space<vmem>>, %arg2: memref<9x128x128xf32, #tpu.memory_space<vmem>>, %arg3: memref<3x128xf32, #tpu.memory_space<vmem>>, %arg4: memref<1x16x128xf32, #tpu.memory_space<vmem>>, %arg5: memref<24x128xf32, #tpu.memory_space<vmem>>) attributes {dimension_semantics = [#tpu.dimension_semantics<parallel>], iteration_bounds = array<i64: 2>, scalar_prefetch = 0 : i64, scratch_operands = 1 : i64, tpu.core_type = #tpu.core_type<tc>, window_params = [{transform_indices = @transform_0, window_bounds = array<i64: 1, 16, 128>}, {pipeline_mode = #tpu.pipeline_mode<synchronous>, transform_indices = @transform_1, window_bounds = array<i64: 9, 128, 128>}, {pipeline_mode = #tpu.pipeline_mode<synchronous>, transform_indices = @transform_2, window_bounds = array<i64: 3, 128>}, {transform_indices = @transform_3, window_bounds = array<i64: 1, 16, 128>}]} {
    %cst = arith.constant 0.000000e+00 : f32
    %0 = vector.broadcast %cst : f32 to vector<4x128xf32>
    %c0 = arith.constant 0 : index
    %c0_0 = arith.constant 0 : index
    %1 = vector.load %arg5[%c0, %c0_0] : memref<24x128xf32, #tpu.memory_space<vmem>>, vector<4x128xf32>
    tpu.vector_store %arg5[%c0, %c0_0], %0 {strides = array<i32>} : memref<24x128xf32, #tpu.memory_space<vmem>>, vector<4x128xf32>,
    %cst_1 = arith.constant 0.000000e+00 : f32
    %2 = vector.broadcast %cst_1 : f32 to vector<4x128xf32>
    %c20 = arith.constant 20 : index
    %c0_2 = arith.constant 0 : index
    %3 = vector.load %arg5[%c20, %c0_2] : memref<24x128xf32, #tpu.memory_space<vmem>>, vector<4x128xf32>
    tpu.vector_store %arg5[%c20, %c0_2], %2 {strides = array<i32>} : memref<24x128xf32, #tpu.memory_space<vmem>>, vector<4x128xf32>,
    %c0_3 = arith.constant 0 : index
    %c0_4 = arith.constant 0 : index
    %c0_5 = arith.constant 0 : index
    %4 = vector.load %arg1[%c0_3, %c0_4, %c0_5] : memref<1x16x128xf32, #tpu.memory_space<vmem>>, vector<1x16x128xf32>
    %5 = vector.shape_cast %4 : vector<1x16x128xf32> to vector<16x128xf32>
    %c4 = arith.constant 4 : index
    %c0_6 = arith.constant 0 : index
    %6 = vector.load %arg5[%c4, %c0_6] : memref<24x128xf32, #tpu.memory_space<vmem>>, vector<16x128xf32>
    tpu.vector_store %arg5[%c4, %c0_6], %5 {strides = array<i32>} : memref<24x128xf32, #tpu.memory_space<vmem>>, vector<16x128xf32>,
    %cst_7 = arith.constant 0.000000e+00 : f32
    %7 = vector.broadcast %cst_7 : f32 to vector<16x128xf32>
    %c3 = arith.constant 3 : index
    %c0_8 = arith.constant 0 : index
    %8 = vector.load %arg5[%c3, %c0_8] : memref<24x128xf32, #tpu.memory_space<vmem>>, vector<16x128xf32>
    %c0_9 = arith.constant 0 : index
    %c0_10 = arith.constant 0 : index
    %c0_11 = arith.constant 0 : index
    %9 = vector.load %arg2[%c0_9, %c0_10, %c0_11] : memref<9x128x128xf32, #tpu.memory_space<vmem>>, vector<1x128x128xf32>
    %10 = vector.shape_cast %9 : vector<1x128x128xf32> to vector<128x128xf32>
    %cst_12 = arith.constant dense<0.000000e+00> : vector<16x128xf32>
    %11 = tpu.matmul %8, %10, %cst_12 {dimension_numbers = #tpu.dot_dimension_numbers<[1], [0], [0], [1], [0, 0, 1, 1], [], []>} : vector<16x128xf32>, vector<128x128xf32>, vector<16x128xf32> -> vector<16x128xf32>
    %12 = arith.addf %7, %11 : vector<16x128xf32>
    %c4_13 = arith.constant 4 : index
    %c0_14 = arith.constant 0 : index
    %13 = vector.load %arg5[%c4_13, %c0_14] : memref<24x128xf32, #tpu.memory_space<vmem>>, vector<16x128xf32>
    %c1 = arith.constant 1 : index
    %c0_15 = arith.constant 0 : index
    %c0_16 = arith.constant 0 : index
    %14 = vector.load %arg2[%c1, %c0_15, %c0_16] : memref<9x128x128xf32, #tpu.memory_space<vmem>>, vector<1x128x128xf32>
    %15 = vector.shape_cast %14 : vector<1x128x128xf32> to vector<128x128xf32>
    %cst_17 = arith.constant dense<0.000000e+00> : vector<16x128xf32>
    %16 = tpu.matmul %13, %15, %cst_17 {dimension_numbers = #tpu.dot_dimension_numbers<[1], [0], [0], [1], [0, 0, 1, 1], [], []>} : vector<16x128xf32>, vector<128x128xf32>, vector<16x128xf32> -> vector<16x128xf32>
    %17 = arith.addf %12, %16 : vector<16x128xf32>
    %c5 = arith.constant 5 : index
    %c0_18 = arith.constant 0 : index
    %18 = vector.load %arg5[%c5, %c0_18] : memref<24x128xf32, #tpu.memory_space<vmem>>, vector<16x128xf32>
    %c2 = arith.constant 2 : index
    %c0_19 = arith.constant 0 : index
    %c0_20 = arith.constant 0 : index
    %19 = vector.load %arg2[%c2, %c0_19, %c0_20] : memref<9x128x128xf32, #tpu.memory_space<vmem>>, vector<1x128x128xf32>
    %20 = vector.shape_cast %19 : vector<1x128x128xf32> to vector<128x128xf32>
    %cst_21 = arith.constant dense<0.000000e+00> : vector<16x128xf32>
    %21 = tpu.matmul %18, %20, %cst_21 {dimension_numbers = #tpu.dot_dimension_numbers<[1], [0], [0], [1], [0, 0, 1, 1], [], []>} : vector<16x128xf32>, vector<128x128xf32>, vector<16x128xf32> -> vector<16x128xf32>
    %22 = arith.addf %17, %21 : vector<16x128xf32>
    %c0_22 = arith.constant 0 : index
    %c0_23 = arith.constant 0 : index
    %23 = vector.load %arg3[%c0_22, %c0_23] : memref<3x128xf32, #tpu.memory_space<vmem>>, vector<1x128xf32>
    %24 = vector.broadcast %23 : vector<1x128xf32> to vector<16x128xf32>
    %25 = arith.addf %22, %24 : vector<16x128xf32>
    %cst_24 = arith.constant 0.000000e+00 : f32
    %26 = vector.broadcast %cst_24 : f32 to vector<16x128xf32>
    %27 = arith.maximumf %25, %26 : vector<16x128xf32>
    %28 = arith.addf %5, %27 : vector<16x128xf32>
    %c4_25 = arith.constant 4 : index
    %c0_26 = arith.constant 0 : index
    %29 = vector.load %arg5[%c4_25, %c0_26] : memref<24x128xf32, #tpu.memory_space<vmem>>, vector<16x128xf32>
    tpu.vector_store %arg5[%c4_25, %c0_26], %27 {strides = array<i32>} : memref<24x128xf32, #tpu.memory_space<vmem>>, vector<16x128xf32>,
    %cst_27 = arith.constant 0.000000e+00 : f32
    %30 = vector.broadcast %cst_27 : f32 to vector<16x128xf32>
    %c2_28 = arith.constant 2 : index
    %c0_29 = arith.constant 0 : index
    %31 = vector.load %arg5[%c2_28, %c0_29] : memref<24x128xf32, #tpu.memory_space<vmem>>, vector<16x128xf32>
    %c3_30 = arith.constant 3 : index
    %c0_31 = arith.constant 0 : index
    %c0_32 = arith.constant 0 : index
    %32 = vector.load %arg2[%c3_30, %c0_31, %c0_32] : memref<9x128x128xf32, #tpu.memory_space<vmem>>, vector<1x128x128xf32>
    %33 = vector.shape_cast %32 : vector<1x128x128xf32> to vector<128x128xf32>
    %cst_33 = arith.constant dense<0.000000e+00> : vector<16x128xf32>
    %34 = tpu.matmul %31, %33, %cst_33 {dimension_numbers = #tpu.dot_dimension_numbers<[1], [0], [0], [1], [0, 0, 1, 1], [], []>} : vector<16x128xf32>, vector<128x128xf32>, vector<16x128xf32> -> vector<16x128xf32>
    %35 = arith.addf %30, %34 : vector<16x128xf32>
    %c4_34 = arith.constant 4 : index
    %c0_35 = arith.constant 0 : index
    %36 = vector.load %arg5[%c4_34, %c0_35] : memref<24x128xf32, #tpu.memory_space<vmem>>, vector<16x128xf32>
    %c4_36 = arith.constant 4 : index
    %c0_37 = arith.constant 0 : index
    %c0_38 = arith.constant 0 : index
    %37 = vector.load %arg2[%c4_36, %c0_37, %c0_38] : memref<9x128x128xf32, #tpu.memory_space<vmem>>, vector<1x128x128xf32>
    %38 = vector.shape_cast %37 : vector<1x128x128xf32> to vector<128x128xf32>
    %cst_39 = arith.constant dense<0.000000e+00> : vector<16x128xf32>
    %39 = tpu.matmul %36, %38, %cst_39 {dimension_numbers = #tpu.dot_dimension_numbers<[1], [0], [0], [1], [0, 0, 1, 1], [], []>} : vector<16x128xf32>, vector<128x128xf32>, vector<16x128xf32> -> vector<16x128xf32>
    %40 = arith.addf %35, %39 : vector<16x128xf32>
    %c6 = arith.constant 6 : index
    %c0_40 = arith.constant 0 : index
    %41 = vector.load %arg5[%c6, %c0_40] : memref<24x128xf32, #tpu.memory_space<vmem>>, vector<16x128xf32>
    %c5_41 = arith.constant 5 : index
    %c0_42 = arith.constant 0 : index
    %c0_43 = arith.constant 0 : index
    %42 = vector.load %arg2[%c5_41, %c0_42, %c0_43] : memref<9x128x128xf32, #tpu.memory_space<vmem>>, vector<1x128x128xf32>
    %43 = vector.shape_cast %42 : vector<1x128x128xf32> to vector<128x128xf32>
    %cst_44 = arith.constant dense<0.000000e+00> : vector<16x128xf32>
    %44 = tpu.matmul %41, %43, %cst_44 {dimension_numbers = #tpu.dot_dimension_numbers<[1], [0], [0], [1], [0, 0, 1, 1], [], []>} : vector<16x128xf32>, vector<128x128xf32>, vector<16x128xf32> -> vector<16x128xf32>
    %45 = arith.addf %40, %44 : vector<16x128xf32>
    %c1_45 = arith.constant 1 : index
    %c0_46 = arith.constant 0 : index
    %46 = vector.load %arg3[%c1_45, %c0_46] : memref<3x128xf32, #tpu.memory_space<vmem>>, vector<1x128xf32>
    %47 = vector.broadcast %46 : vector<1x128xf32> to vector<16x128xf32>
    %48 = arith.addf %45, %47 : vector<16x128xf32>
    %cst_47 = arith.constant 0.000000e+00 : f32
    %49 = vector.broadcast %cst_47 : f32 to vector<16x128xf32>
    %50 = arith.maximumf %48, %49 : vector<16x128xf32>
    %51 = arith.addf %28, %50 : vector<16x128xf32>
    %c4_48 = arith.constant 4 : index
    %c0_49 = arith.constant 0 : index
    %52 = vector.load %arg5[%c4_48, %c0_49] : memref<24x128xf32, #tpu.memory_space<vmem>>, vector<16x128xf32>
    tpu.vector_store %arg5[%c4_48, %c0_49], %50 {strides = array<i32>} : memref<24x128xf32, #tpu.memory_space<vmem>>, vector<16x128xf32>,
    %cst_50 = arith.constant 0.000000e+00 : f32
    %53 = vector.broadcast %cst_50 : f32 to vector<16x128xf32>
    %c0_51 = arith.constant 0 : index
    %c0_52 = arith.constant 0 : index
    %54 = vector.load %arg5[%c0_51, %c0_52] : memref<24x128xf32, #tpu.memory_space<vmem>>, vector<16x128xf32>
    %c6_53 = arith.constant 6 : index
    %c0_54 = arith.constant 0 : index
    %c0_55 = arith.constant 0 : index
    %55 = vector.load %arg2[%c6_53, %c0_54, %c0_55] : memref<9x128x128xf32, #tpu.memory_space<vmem>>, vector<1x128x128xf32>
    %56 = vector.shape_cast %55 : vector<1x128x128xf32> to vector<128x128xf32>
    %cst_56 = arith.constant dense<0.000000e+00> : vector<16x128xf32>
    %57 = tpu.matmul %54, %56, %cst_56 {dimension_numbers = #tpu.dot_dimension_numbers<[1], [0], [0], [1], [0, 0, 1, 1], [], []>} : vector<16x128xf32>, vector<128x128xf32>, vector<16x128xf32> -> vector<16x128xf32>
    %58 = arith.addf %53, %57 : vector<16x128xf32>
    %c4_57 = arith.constant 4 : index
    %c0_58 = arith.constant 0 : index
    %59 = vector.load %arg5[%c4_57, %c0_58] : memref<24x128xf32, #tpu.memory_space<vmem>>, vector<16x128xf32>
    %c7 = arith.constant 7 : index
    %c0_59 = arith.constant 0 : index
    %c0_60 = arith.constant 0 : index
    %60 = vector.load %arg2[%c7, %c0_59, %c0_60] : memref<9x128x128xf32, #tpu.memory_space<vmem>>, vector<1x128x128xf32>
    %61 = vector.shape_cast %60 : vector<1x128x128xf32> to vector<128x128xf32>
    %cst_61 = arith.constant dense<0.000000e+00> : vector<16x128xf32>
    %62 = tpu.matmul %59, %61, %cst_61 {dimension_numbers = #tpu.dot_dimension_numbers<[1], [0], [0], [1], [0, 0, 1, 1], [], []>} : vector<16x128xf32>, vector<128x128xf32>, vector<16x128xf32> -> vector<16x128xf32>
    %63 = arith.addf %58, %62 : vector<16x128xf32>
    %c8 = arith.constant 8 : index
    %c0_62 = arith.constant 0 : index
    %64 = vector.load %arg5[%c8, %c0_62] : memref<24x128xf32, #tpu.memory_space<vmem>>, vector<16x128xf32>
    %c8_63 = arith.constant 8 : index
    %c0_64 = arith.constant 0 : index
    %c0_65 = arith.constant 0 : index
    %65 = vector.load %arg2[%c8_63, %c0_64, %c0_65] : memref<9x128x128xf32, #tpu.memory_space<vmem>>, vector<1x128x128xf32>
    %66 = vector.shape_cast %65 : vector<1x128x128xf32> to vector<128x128xf32>
    %cst_66 = arith.constant dense<0.000000e+00> : vector<16x128xf32>
    %67 = tpu.matmul %64, %66, %cst_66 {dimension_numbers = #tpu.dot_dimension_numbers<[1], [0], [0], [1], [0, 0, 1, 1], [], []>} : vector<16x128xf32>, vector<128x128xf32>, vector<16x128xf32> -> vector<16x128xf32>
    %68 = arith.addf %63, %67 : vector<16x128xf32>
    %c2_67 = arith.constant 2 : index
    %c0_68 = arith.constant 0 : index
    %69 = vector.load %arg3[%c2_67, %c0_68] : memref<3x128xf32, #tpu.memory_space<vmem>>, vector<1x128xf32>
    %70 = vector.broadcast %69 : vector<1x128xf32> to vector<16x128xf32>
    %71 = arith.addf %68, %70 : vector<16x128xf32>
    %cst_69 = arith.constant 0.000000e+00 : f32
    %72 = vector.broadcast %cst_69 : f32 to vector<16x128xf32>
    %73 = arith.maximumf %71, %72 : vector<16x128xf32>
    %74 = arith.addf %51, %73 : vector<16x128xf32>
    %c0_70 = arith.constant 0 : index
    %c0_71 = arith.constant 0 : index
    %c0_72 = arith.constant 0 : index
    %75 = vector.load %arg4[%c0_70, %c0_71, %c0_72] : memref<1x16x128xf32, #tpu.memory_space<vmem>>, vector<1x16x128xf32>
    %76 = vector.shape_cast %75 : vector<1x16x128xf32> to vector<16x128xf32>
    %77 = vector.shape_cast %74 : vector<16x128xf32> to vector<1x16x128xf32>
    tpu.vector_store %arg4[%c0_70, %c0_71, %c0_72], %77 {strides = array<i32>} : memref<1x16x128xf32, #tpu.memory_space<vmem>>, vector<1x16x128xf32>,
    return
  }
  func.func @transform_0(%arg0: i32) -> (i32, i32, i32) {
    %c0_i32 = arith.constant 0 : i32
    %c0_i32_0 = arith.constant 0 : i32
    %c0_i32_1 = arith.constant 0 : i32
    return %arg0, %c0_i32, %c0_i32_0 : i32, i32, i32
  }
  func.func @transform_1(%arg0: i32) -> (i32, i32, i32) {
    %c0_i32 = arith.constant 0 : i32
    %c0_i32_0 = arith.constant 0 : i32
    %c0_i32_1 = arith.constant 0 : i32
    %c0_i32_2 = arith.constant 0 : i32
    return %c0_i32, %c0_i32_0, %c0_i32_1 : i32, i32, i32
  }
  func.func @transform_2(%arg0: i32) -> (i32, i32) {
    %c0_i32 = arith.constant 0 : i32
    %c0_i32_0 = arith.constant 0 : i32
    %c0_i32_1 = arith.constant 0 : i32
    return %c0_i32, %c0_i32_0 : i32, i32
  }
  func.func @transform_3(%arg0: i32) -> (i32, i32, i32) {
    %c0_i32 = arith.constant 0 : i32
    %c0_i32_0 = arith.constant 0 : i32
    %c0_i32_1 = arith.constant 0 : i32
    return %arg0, %c0_i32, %c0_i32_0 : i32, i32, i32
  }
}

</mosaic_0001>

<llo_original>
// kernel: tpu_custom_call.1
$region0: #{tpu_custom_call.1}
  #allocation0 [shape = 'u32[]', space=smem, size = 0x4, offset = 0x4, fixed_abs, tag = 'smem constant byte address 0x4 - core index']
  #allocation1 [shape = 'u32[72,128]{1,0:T(1,128)}', space=vmem, size = 0x9000, scoped, tag = 'internal scratch']
  #allocation2 [shape = 'f32[24,128]{1,0:T(8,128)}', space=vmem, size = 0x3000, scoped, tag = 'scratch operand']
  %s0 = inlined_call_operand.hbm [shape: f32[2,16,128], index: 0, kind: input, shape index: {}]
  %s1 = inlined_call_operand.hbm [shape: f32[9,128,128], index: 1, kind: input, shape index: {}]
  %s2 = inlined_call_operand.hbm [shape: f32[3,128], index: 2, kind: input, shape index: {}]
  %s3 = inlined_call_operand.hbm [shape: f32[2,16,128], index: 3, kind: output, shape index: {}]
  %s4 = sld [smem:[#allocation0]]
  $region57: #{tpu_custom_call.1} parent=0
    _
  %s6 = ssub.s32 1, %s4
  %s7 = scalar_select 0, %s6, %s4
  $region1: #{tpu_custom_call.1} parent=0
    #allocation3 [shape = 'u8[16384]{0}', space=vmem, size = 0x4000, scoped, tag = 'input window, operand 0']
    #allocation4 [shape = 's32[2]{0}', space=sflag, size = 0x8, scoped, tag = 'scoped memory for tpu_custom_call.1']
    #allocation5 [shape = 's32[2]{0}', space=sflag, size = 0x8, scoped, tag = 'scoped memory for tpu_custom_call.1']
    #allocation6 [shape = 'u8[589824]{0}', space=vmem, size = 0x90000, scoped, tag = 'input window, operand 1, single buffered']
    #allocation7 [shape = 's32[1]{0}', space=sflag, size = 0x4, scoped, tag = 'scoped memory for tpu_custom_call.1']
    #allocation8 [shape = 'u8[2048]{0}', space=vmem, size = 0x800, scoped, tag = 'input window, operand 2, single buffered']
    #allocation9 [shape = 'u8[16384]{0}', space=vmem, size = 0x4000, scoped, tag = 'output window, operand 0']
    %8 = vsyncpa [#allocation4], 0
    %s9 = scalar_lea.sflag [#allocation4], 1
    %10 = vsyncpa %s9, 0
    %11 = vsyncpa [#allocation7], 0
    %12 = vsyncpa [#allocation5], 0
    %s13 = scalar_lea.sflag [#allocation5], 1
    %14 = vsyncpa %s13, 0
    loop: start=0, step=1, limit=4
    $region2: #{tpu_custom_call.1} parent=1 // loop_pre_header
      _
    $region3: #{tpu_custom_call.1} parent=1 // loop_header
      %s16 = sphi 0, %s20
      %p17 = scmp.ge.s32.totalorder %s16, 4
      %s26 = sphi 0, %s28
      %s29 = sphi 0, %s26
      %s30 = sphi 0, %s29
      %s46 = sphi 0, %s30
      %s50 = sphi 0, %s50
      %s52 = sphi 0, %s50
      %s53 = sphi 0, %s52
      %s67 = sphi 0, %s53
      %s71 = sphi 0, %s71
      %s73 = sphi 0, %s71
      %s74 = sphi 0, %s73
      %s88 = sphi 0, %s74
      %s94 = sphi 0, %s96
      %s97 = sphi 0, %s94
      %s98 = sphi 0, %s97
      %s114 = sphi 0, %s98
    $region4: #{tpu_custom_call.1} parent=1 // loop_header_branch
      %19 = sbr.rel (%p17) target = $region8
    $region5: #{tpu_custom_call.1} parent=1 // loop_body
      %s21 = ssub.s32 %s16, 1
      %s22 = ssub.s32 %s16, 2
      %s23 = sadd.s32 %s16, 1
      %s24 = ssub.s32 %s16, %s23
      %p25 = scmp.eq.s32.totalorder %s24, 0
      %s27 = sadd.s32 %s26, 1
      %s28 = scalar_select %p25, %s26, %s27
      %p31 = pneg %p25
      %p32 = scmp.eq.s32.totalorder %s16, 1
      %p33 = por %p31, %p32
      %p34 = scmp.ne.s32.totalorder %s26, %s29
      %p35 = scmp.eq.s32.totalorder %s16, 0
      %p36 = por %p34, %p35
      %p37 = scmp.ne.s32.totalorder %s26, %s29
      %p38 = scmp.eq.s32.totalorder %s21, 1
      %p39 = por %p37, %p38
      %p40 = scmp.ne.s32.totalorder %s29, %s30
      %p41 = scmp.eq.s32.totalorder %s21, 0
      %p42 = por %p40, %p41
      %p43 = scmp.ne.s32.totalorder %s29, %s30
      %p44 = scmp.eq.s32.totalorder %s22, 1
      %p45 = por %p43, %p44
      %p47 = scmp.ne.s32.totalorder %s30, %s46
      %p48 = scmp.eq.s32.totalorder %s22, 0
      %p49 = por %p47, %p48
      %s51 = sadd.s32 %s50, 1
      %p54 = scmp.eq.s32.totalorder %s16, 1
      %p55 = scmp.ne.s32.totalorder %s50, %s52
      %p56 = scmp.eq.s32.totalorder %s16, 0
      %p57 = por %p55, %p56
      %p58 = scmp.ne.s32.totalorder %s50, %s52
      %p59 = scmp.eq.s32.totalorder %s21, 1
      %p60 = por %p58, %p59
      %p61 = scmp.ne.s32.totalorder %s52, %s53
      %p62 = scmp.eq.s32.totalorder %s21, 0
      %p63 = por %p61, %p62
      %p64 = scmp.ne.s32.totalorder %s52, %s53
      %p65 = scmp.eq.s32.totalorder %s22, 1
      %p66 = por %p64, %p65
      %p68 = scmp.ne.s32.totalorder %s53, %s67
      %p69 = scmp.eq.s32.totalorder %s22, 0
      %p70 = por %p68, %p69
      %s72 = sadd.s32 %s71, 1
      %p75 = scmp.eq.s32.totalorder %s16, 1
      %p76 = scmp.ne.s32.totalorder %s71, %s73
      %p77 = scmp.eq.s32.totalorder %s16, 0
      %p78 = por %p76, %p77
      %p79 = scmp.ne.s32.totalorder %s71, %s73
      %p80 = scmp.eq.s32.totalorder %s21, 1
      %p81 = por %p79, %p80
      %p82 = scmp.ne.s32.totalorder %s73, %s74
      %p83 = scmp.eq.s32.totalorder %s21, 0
      %p84 = por %p82, %p83
      %p85 = scmp.ne.s32.totalorder %s73, %s74
      %p86 = scmp.eq.s32.totalorder %s22, 1
      %p87 = por %p85, %p86
      %p89 = scmp.ne.s32.totalorder %s74, %s88
      %p90 = scmp.eq.s32.totalorder %s22, 0
      %p91 = por %p89, %p90
      %s92 = ssub.s32 %s16, %s23
      %p93 = scmp.eq.s32.totalorder %s92, 0
      %s95 = sadd.s32 %s94, 1
      %s96 = scalar_select %p93, %s94, %s95
      %p99 = pneg %p93
      %p100 = scmp.eq.s32.totalorder %s16, 1
      %p101 = por %p99, %p100
      %p102 = scmp.ne.s32.totalorder %s94, %s97
      %p103 = scmp.eq.s32.totalorder %s16, 0
      %p104 = por %p102, %p103
      %p105 = scmp.ne.s32.totalorder %s94, %s97
      %p106 = scmp.eq.s32.totalorder %s21, 1
      %p107 = por %p105, %p106
      %p108 = scmp.ne.s32.totalorder %s97, %s98
      %p109 = scmp.eq.s32.totalorder %s21, 0
      %p110 = por %p108, %p109
      %p111 = scmp.ne.s32.totalorder %s97, %s98
      %p112 = scmp.eq.s32.totalorder %s22, 1
      %p113 = por %p111, %p112
      %p115 = scmp.ne.s32.totalorder %s98, %s114
      %p116 = scmp.eq.s32.totalorder %s22, 0
      %p117 = por %p115, %p116
      %p118 = scmp.le.s32.totalorder 1, %s16
      %p119 = scmp.lt.s32.totalorder %s16, 3
      %p120 = pnand %p118, %p119
      %p121 = pneg %p120
      // Predicated region
      $region9: #{tpu_custom_call.1} parent=5 // pred_check
        _
      $region10: #{tpu_custom_call.1} parent=5 // pred_check_branch
        %123 = sbr.rel (%p120) target = $region12
      $region11: #{tpu_custom_call.1} parent=5 // pred_region
        %s124 = ssub.s32 %s16, 1
        // Predicated region
        $region13: #{tpu_custom_call.1} parent=11 // pred_check
          %p125 = pneg %p63
        $region14: #{tpu_custom_call.1} parent=11 // pred_check_branch
          %127 = sbr.rel (%p125) target = $region16
        $region15: #{tpu_custom_call.1} parent=11 // pred_region
          %129 = vsyncadd [#allocation7], 0
          %s130 = sshll.u32 %s1, 4
          %s131 = int_to_ptr.hbm [resolvable:$true] %s130
          %s132 = sshll.u32 [#allocation6], 4
          %s133 = int_to_ptr.vmem [resolvable:$true] %s132
          %138 = dma.hbm_to_vmem [thread:$0]  %s131, 18432, %s133, [#allocation7], 128, 128, 8
        $region16: #{tpu_custom_call.1} parent=11 // pred_fallthru
          _
        // Predicated region
        $region17: #{tpu_custom_call.1} parent=11 // pred_check
          %p139 = pneg %p84
        $region18: #{tpu_custom_call.1} parent=11 // pred_check_branch
          %141 = sbr.rel (%p139) target = $region20
        $region19: #{tpu_custom_call.1} parent=11 // pred_region
          %143 = vsyncadd [#allocation7], 0
          %s145 = sshll.u32 %s2, 4
          %s146 = int_to_ptr.hbm [resolvable:$true] %s145
          %s147 = sshll.u32 [#allocation8], 4
          %s148 = int_to_ptr.vmem [resolvable:$true] %s147
          %150 = dma.hbm_to_vmem [thread:$0]  %s146, 64, %s148, [#allocation7]
        $region20: #{tpu_custom_call.1} parent=11 // pred_fallthru
          _
      $region12: #{tpu_custom_call.1} parent=5 // pred_fallthru
        _
      %p151 = scmp.lt.s32.totalorder %s16, 2
      // Predicated region
      $region21: #{tpu_custom_call.1} parent=5 // pred_check
        %p152 = pneg %p151
      $region22: #{tpu_custom_call.1} parent=5 // pred_check_branch
        %154 = sbr.rel (%p152) target = $region24
      $region23: #{tpu_custom_call.1} parent=5 // pred_region
        // Predicated region
        $region25: #{tpu_custom_call.1} parent=23 // pred_check
          %p155 = pneg %p36
        $region26: #{tpu_custom_call.1} parent=23 // pred_check_branch
          %157 = sbr.rel (%p155) target = $region28
        $region27: #{tpu_custom_call.1} parent=23 // pred_region
          %s158 = sand.u32 %s26, 1
          %s159 = scalar_lea.sflag [#allocation4], %s158
          %s160 = sand.u32 %s26, 1
          %s161 = smul.addr %s160, 16
          %s162 = scalar_lea.vmem [#allocation3], %s161
          %164 = vsyncadd %s159, 0
          %s165 = smul.addr %s16, 2
          %s166 = smul.addr %s165, 8
          %s167 = scalar_lea.hbm %s0, %s166
          %s168 = sshll.u32 %s167, 4
          %s169 = int_to_ptr.hbm [resolvable:$true] %s168
          %s170 = sshll.u32 %s162, 4
          %s171 = int_to_ptr.vmem [resolvable:$true] %s170
          %176 = dma.hbm_to_vmem [thread:$0]  %s169, 256, %s171, %s159, 128, 128, 8
        $region28: #{tpu_custom_call.1} parent=23 // pred_fallthru
          _
      $region24: #{tpu_custom_call.1} parent=5 // pred_fallthru
        _
      %p177 = scmp.le.s32.totalorder 1, %s16
      %p178 = scmp.lt.s32.totalorder %s16, 3
      %p179 = pnand %p177, %p178
      %p180 = pneg %p179
      // Predicated region
      $region29: #{tpu_custom_call.1} parent=5 // pred_check
        _
      $region30: #{tpu_custom_call.1} parent=5 // pred_check_branch
        %182 = sbr.rel (%p179) target = $region32
      $region31: #{tpu_custom_call.1} parent=5 // pred_region
        %s183 = ssub.s32 %s16, 1
        %s184 = sand.u32 %s29, 1
        %s185 = scalar_lea.sflag [#allocation4], %s184
        %s186 = sand.u32 %s29, 1
        %s187 = smul.addr %s186, 16
        %s188 = scalar_lea.vmem [#allocation3], %s187
        // Predicated region
        $region33: #{tpu_custom_call.1} parent=31 // pred_check
          %p189 = pneg %p42
        $region34: #{tpu_custom_call.1} parent=31 // pred_check_branch
          %191 = sbr.rel (%p189) target = $region36
        $region35: #{tpu_custom_call.1} parent=31 // pred_region
          %193 = dma.done %s185, 256
        $region36: #{tpu_custom_call.1} parent=31 // pred_fallthru
          _
        // Predicated region
        $region37: #{tpu_custom_call.1} parent=31 // pred_check
          %p194 = pneg %p63
        $region38: #{tpu_custom_call.1} parent=31 // pred_check_branch
          %196 = sbr.rel (%p194) target = $region40
        $region39: #{tpu_custom_call.1} parent=31 // pred_region
          %198 = dma.done [#allocation7], 18432
        $region40: #{tpu_custom_call.1} parent=31 // pred_fallthru
          _
        // Predicated region
        $region41: #{tpu_custom_call.1} parent=31 // pred_check
          %p199 = pneg %p84
        $region42: #{tpu_custom_call.1} parent=31 // pred_check_branch
          %201 = sbr.rel (%p199) target = $region44
        $region43: #{tpu_custom_call.1} parent=31 // pred_region
          %203 = dma.done [#allocation7], 64
        $region44: #{tpu_custom_call.1} parent=31 // pred_fallthru
          _
        %s204 = sand.u32 %s29, 1
        %s205 = scalar_lea.sflag [#allocation4], %s204
        %s206 = sand.u32 %s29, 1
        %s207 = smul.addr %s206, 16
        %s208 = scalar_lea.vmem [#allocation3], %s207
        %p209 = pneg %p42
        %p210 = pneg %p39
        %p211 = pneg %p63
        %p212 = pneg %p60
        %p213 = pneg %p84
        %p214 = pneg %p81
        %p215 = pneg %p110
        %p216 = pneg %p107
        %s217 = sand.u32 %s97, 1
        %s218 = scalar_lea.sflag [#allocation5], %s217
        %s219 = sand.u32 %s97, 1
        %s220 = smul.addr %s219, 16
        %s221 = scalar_lea.vmem [#allocation9], %s220
        %222 = vst [vmem:[#allocation2] sm:$0xf] 0.0
        %223 = vst [vmem:[#allocation2 + $0x14] sm:$0xf] 0.0
        %v224 = vld [vmem:[%s188] sm:$0xff]
        %v225 = vld [vmem:[%s188 + $0x8] sm:$0xff]
        %226 = vst [vmem:[#allocation2 + $0x4] sm:$0xff] %v224
        %227 = vst [vmem:[#allocation2 + $0xc] sm:$0xff] %v225
        %v228 = vld [vmem:[#allocation2 + $0x3] sm:$0xff]
        %v229 = vld [vmem:[#allocation2 + $0xb] sm:$0xff]
        %v230 = vld [vmem:[#allocation6] sm:$0xff]
        %v231 = vld [vmem:[#allocation6 + $0x8] sm:$0xff]
        %v232 = vld [vmem:[#allocation6 + $0x10] sm:$0xff]
        %v233 = vld [vmem:[#allocation6 + $0x18] sm:$0xff]
        %v234 = vld [vmem:[#allocation6 + $0x20] sm:$0xff]
        %v235 = vld [vmem:[#allocation6 + $0x28] sm:$0xff]
        %v236 = vld [vmem:[#allocation6 + $0x30] sm:$0xff]
        %v237 = vld [vmem:[#allocation6 + $0x38] sm:$0xff]
        %v238 = vld [vmem:[#allocation6 + $0x40] sm:$0xff]
        %v239 = vld [vmem:[#allocation6 + $0x48] sm:$0xff]
        %v240 = vld [vmem:[#allocation6 + $0x50] sm:$0xff]
        %v241 = vld [vmem:[#allocation6 + $0x58] sm:$0xff]
        %v242 = vld [vmem:[#allocation6 + $0x60] sm:$0xff]
        %v243 = vld [vmem:[#allocation6 + $0x68] sm:$0xff]
        %v244 = vld [vmem:[#allocation6 + $0x70] sm:$0xff]
        %v245 = vld [vmem:[#allocation6 + $0x78] sm:$0xff]
        %v246 = vld [vmem:[#allocation2 + $0x4] sm:$0xff]
        %v247 = vld [vmem:[#allocation2 + $0xc] sm:$0xff]
        %s248 = scalar_lea.vmem [#allocation6], 128
        %v249 = vld [vmem:[%s248] sm:$0xff]
        %v250 = vld [vmem:[%s248 + $0x8] sm:$0xff]
        %v251 = vld [vmem:[%s248 + $0x10] sm:$0xff]
        %v252 = vld [vmem:[%s248 + $0x18] sm:$0xff]
        %v253 = vld [vmem:[%s248 + $0x20] sm:$0xff]
        %v254 = vld [vmem:[%s248 + $0x28] sm:$0xff]
        %v255 = vld [vmem:[%s248 + $0x30] sm:$0xff]
        %v256 = vld [vmem:[%s248 + $0x38] sm:$0xff]
        %v257 = vld [vmem:[%s248 + $0x40] sm:$0xff]
        %v258 = vld [vmem:[%s248 + $0x48] sm:$0xff]
        %v259 = vld [vmem:[%s248 + $0x50] sm:$0xff]
        %v260 = vld [vmem:[%s248 + $0x58] sm:$0xff]
        %v261 = vld [vmem:[%s248 + $0x60] sm:$0xff]
        %v262 = vld [vmem:[%s248 + $0x68] sm:$0xff]
        %v263 = vld [vmem:[%s248 + $0x70] sm:$0xff]
        %v264 = vld [vmem:[%s248 + $0x78] sm:$0xff]
        %265 = vmatpush.msra.mxu0 %v264
        %266 = vmatpush.msra.mxu0 %v263
        %267 = vmatpush.msra.mxu0 %v262
        %268 = vmatpush.msra.mxu0 %v261
        %269 = vmatpush.msra.mxu0 %v260
        %270 = vmatpush.msra.mxu0 %v259
        %271 = vmatpush.msra.mxu0 %v258
        %272 = vmatpush.msra.mxu0 %v257
        %273 = vmatpush.msra.mxu0 %v256
        %274 = vmatpush.msra.mxu0 %v255
        %275 = vmatpush.msra.mxu0 %v254
        %276 = vmatpush.msra.mxu0 %v253
        %277 = vmatpush.msra.mxu0 %v252
        %278 = vmatpush.msra.mxu0 %v251
        %279 = vmatpush.msra.mxu0 %v250
        %280 = vmatpush.msra.mxu0 %v249
        %281 = vmatmul.f32.gmra.mxu0 %v246
        %v282 = vpop.f32.mrf.mxu0
        %v283 = vadd.f32 0.0, %v282
        %284 = vmatmul.f32.gmra.mxu0 %v247
        %v285 = vpop.f32.mrf.mxu0
        %v286 = vadd.f32 0.0, %v285
        %287 = vdwg.mxu0
        %288 = vmatpush.msra.mxu0 %v245
        %289 = vmatpush.msra.mxu0 %v244
        %290 = vmatpush.msra.mxu0 %v243
        %291 = vmatpush.msra.mxu0 %v242
        %292 = vmatpush.msra.mxu0 %v241
        %293 = vmatpush.msra.mxu0 %v240
        %294 = vmatpush.msra.mxu0 %v239
        %295 = vmatpush.msra.mxu0 %v238
        %296 = vmatpush.msra.mxu0 %v237
        %297 = vmatpush.msra.mxu0 %v236
        %298 = vmatpush.msra.mxu0 %v235
        %299 = vmatpush.msra.mxu0 %v234
        %300 = vmatpush.msra.mxu0 %v233
        %301 = vmatpush.msra.mxu0 %v232
        %302 = vmatpush.msra.mxu0 %v231
        %303 = vmatpush.msra.mxu0 %v230
        %304 = vmatmul.f32.gmra.mxu0 %v228
        %v305 = vpop.f32.mrf.mxu0
        %v306 = vadd.f32 %v283, %v305
        %307 = vmatmul.f32.gmra.mxu0 %v229
        %v308 = vpop.f32.mrf.mxu0
        %v309 = vadd.f32 %v286, %v308
        %310 = vdwg.mxu0
        %v311 = vld [vmem:[#allocation2 + $0x5] sm:$0xff]
        %v312 = vld [vmem:[#allocation2 + $0xd] sm:$0xff]
        %s313 = scalar_lea.vmem [#allocation6], 256
        %v314 = vld [vmem:[%s313] sm:$0xff]
        %v315 = vld [vmem:[%s313 + $0x8] sm:$0xff]
        %v316 = vld [vmem:[%s313 + $0x10] sm:$0xff]
        %v317 = vld [vmem:[%s313 + $0x18] sm:$0xff]
        %v318 = vld [vmem:[%s313 + $0x20] sm:$0xff]
        %v319 = vld [vmem:[%s313 + $0x28] sm:$0xff]
        %v320 = vld [vmem:[%s313 + $0x30] sm:$0xff]
        %v321 = vld [vmem:[%s313 + $0x38] sm:$0xff]
        %v322 = vld [vmem:[%s313 + $0x40] sm:$0xff]
        %v323 = vld [vmem:[%s313 + $0x48] sm:$0xff]
        %v324 = vld [vmem:[%s313 + $0x50] sm:$0xff]
        %v325 = vld [vmem:[%s313 + $0x58] sm:$0xff]
        %v326 = vld [vmem:[%s313 + $0x60] sm:$0xff]
        %v327 = vld [vmem:[%s313 + $0x68] sm:$0xff]
        %v328 = vld [vmem:[%s313 + $0x70] sm:$0xff]
        %v329 = vld [vmem:[%s313 + $0x78] sm:$0xff]
        %330 = vmatpush.msra.mxu0 %v329
        %331 = vmatpush.msra.mxu0 %v328
        %332 = vmatpush.msra.mxu0 %v327
        %333 = vmatpush.msra.mxu0 %v326
        %334 = vmatpush.msra.mxu0 %v325
        %335 = vmatpush.msra.mxu0 %v324
        %336 = vmatpush.msra.mxu0 %v323
        %337 = vmatpush.msra.mxu0 %v322
        %338 = vmatpush.msra.mxu0 %v321
        %339 = vmatpush.msra.mxu0 %v320
        %340 = vmatpush.msra.mxu0 %v319
        %341 = vmatpush.msra.mxu0 %v318
        %342 = vmatpush.msra.mxu0 %v317
        %343 = vmatpush.msra.mxu0 %v316
        %344 = vmatpush.msra.mxu0 %v315
        %345 = vmatpush.msra.mxu0 %v314
        %346 = vmatmul.f32.gmra.mxu0 %v311
        %v347 = vpop.f32.mrf.mxu0
        %v348 = vadd.f32 0.0, %v347
        %349 = vmatmul.f32.gmra.mxu0 %v312
        %v350 = vpop.f32.mrf.mxu0
        %v351 = vadd.f32 0.0, %v350
        %352 = vdwg.mxu0
        %v353 = vadd.f32 %v306, %v348
        %v354 = vadd.f32 %v309, %v351
        %v355 = vld [vmem:[#allocation8] sm:$0x1]
        %v356 = vperm.slane %v355, 0
        %v357 = vadd.f32 %v353, %v356
        %v358 = vadd.f32 %v354, %v356
        %v359 = vmax.f32 %v357, 0.0
        %v360 = vmax.f32 %v358, 0.0
        %v361 = vadd.f32 %v224, %v359
        %v362 = vadd.f32 %v225, %v360
        %363 = vst [vmem:[#allocation2 + $0x4] sm:$0xff] %v359
        %364 = vst [vmem:[#allocation2 + $0xc] sm:$0xff] %v360
        %v365 = vld [vmem:[#allocation2 + $0x2] sm:$0xff]
        %v366 = vld [vmem:[#allocation2 + $0xa] sm:$0xff]
        %s367 = scalar_lea.vmem [#allocation6], 384
        %v368 = vld [vmem:[%s367] sm:$0xff]
        %v369 = vld [vmem:[%s367 + $0x8] sm:$0xff]
        %v370 = vld [vmem:[%s367 + $0x10] sm:$0xff]
        %v371 = vld [vmem:[%s367 + $0x18] sm:$0xff]
        %v372 = vld [vmem:[%s367 + $0x20] sm:$0xff]
        %v373 = vld [vmem:[%s367 + $0x28] sm:$0xff]
        %v374 = vld [vmem:[%s367 + $0x30] sm:$0xff]
        %v375 = vld [vmem:[%s367 + $0x38] sm:$0xff]
        %v376 = vld [vmem:[%s367 + $0x40] sm:$0xff]
        %v377 = vld [vmem:[%s367 + $0x48] sm:$0xff]
        %v378 = vld [vmem:[%s367 + $0x50] sm:$0xff]
        %v379 = vld [vmem:[%s367 + $0x58] sm:$0xff]
        %v380 = vld [vmem:[%s367 + $0x60] sm:$0xff]
        %v381 = vld [vmem:[%s367 + $0x68] sm:$0xff]
        %v382 = vld [vmem:[%s367 + $0x70] sm:$0xff]
        %v383 = vld [vmem:[%s367 + $0x78] sm:$0xff]
        %v384 = vld [vmem:[#allocation2 + $0x4] sm:$0xff]
        %v385 = vld [vmem:[#allocation2 + $0xc] sm:$0xff]
        %s386 = scalar_lea.vmem [#allocation6], 512
        %v387 = vld [vmem:[%s386] sm:$0xff]
        %v388 = vld [vmem:[%s386 + $0x8] sm:$0xff]
        %v389 = vld [vmem:[%s386 + $0x10] sm:$0xff]
        %v390 = vld [vmem:[%s386 + $0x18] sm:$0xff]
        %v391 = vld [vmem:[%s386 + $0x20] sm:$0xff]
        %v392 = vld [vmem:[%s386 + $0x28] sm:$0xff]
        %v393 = vld [vmem:[%s386 + $0x30] sm:$0xff]
        %v394 = vld [vmem:[%s386 + $0x38] sm:$0xff]
        %v395 = vld [vmem:[%s386 + $0x40] sm:$0xff]
        %v396 = vld [vmem:[%s386 + $0x48] sm:$0xff]
        %v397 = vld [vmem:[%s386 + $0x50] sm:$0xff]
        %v398 = vld [vmem:[%s386 + $0x58] sm:$0xff]
        %v399 = vld [vmem:[%s386 + $0x60] sm:$0xff]
        %v400 = vld [vmem:[%s386 + $0x68] sm:$0xff]
        %v401 = vld [vmem:[%s386 + $0x70] sm:$0xff]
        %v402 = vld [vmem:[%s386 + $0x78] sm:$0xff]
        %403 = vmatpush.msra.mxu0 %v402
        %404 = vmatpush.msra.mxu0 %v401
        %405 = vmatpush.msra.mxu0 %v400
        %406 = vmatpush.msra.mxu0 %v399
        %407 = vmatpush.msra.mxu0 %v398
        %408 = vmatpush.msra.mxu0 %v397
        %409 = vmatpush.msra.mxu0 %v396
        %410 = vmatpush.msra.mxu0 %v395
        %411 = vmatpush.msra.mxu0 %v394
        %412 = vmatpush.msra.mxu0 %v393
        %413 = vmatpush.msra.mxu0 %v392
        %414 = vmatpush.msra.mxu0 %v391
        %415 = vmatpush.msra.mxu0 %v390
        %416 = vmatpush.msra.mxu0 %v389
        %417 = vmatpush.msra.mxu0 %v388
        %418 = vmatpush.msra.mxu0 %v387
        %419 = vmatmul.f32.gmra.mxu0 %v384
        %v420 = vpop.f32.mrf.mxu0
        %v421 = vadd.f32 0.0, %v420
        %422 = vmatmul.f32.gmra.mxu0 %v385
        %v423 = vpop.f32.mrf.mxu0
        %v424 = vadd.f32 0.0, %v423
        %425 = vdwg.mxu0
        %426 = vmatpush.msra.mxu0 %v383
        %427 = vmatpush.msra.mxu0 %v382
        %428 = vmatpush.msra.mxu0 %v381
        %429 = vmatpush.msra.mxu0 %v380
        %430 = vmatpush.msra.mxu0 %v379
        %431 = vmatpush.msra.mxu0 %v378
        %432 = vmatpush.msra.mxu0 %v377
        %433 = vmatpush.msra.mxu0 %v376
        %434 = vmatpush.msra.mxu0 %v375
        %435 = vmatpush.msra.mxu0 %v374
        %436 = vmatpush.msra.mxu0 %v373
        %437 = vmatpush.msra.mxu0 %v372
        %438 = vmatpush.msra.mxu0 %v371
        %439 = vmatpush.msra.mxu0 %v370
        %440 = vmatpush.msra.mxu0 %v369
        %441 = vmatpush.msra.mxu0 %v368
        %442 = vmatmul.f32.gmra.mxu0 %v365
        %v443 = vpop.f32.mrf.mxu0
        %v444 = vadd.f32 %v421, %v443
        %445 = vmatmul.f32.gmra.mxu0 %v366
        %v446 = vpop.f32.mrf.mxu0
        %v447 = vadd.f32 %v424, %v446
        %448 = vdwg.mxu0
        %v449 = vld [vmem:[#allocation2 + $0x6] sm:$0xff]
        %v450 = vld [vmem:[#allocation2 + $0xe] sm:$0xff]
        %s451 = scalar_lea.vmem [#allocation6], 640
        %v452 = vld [vmem:[%s451] sm:$0xff]
        %v453 = vld [vmem:[%s451 + $0x8] sm:$0xff]
        %v454 = vld [vmem:[%s451 + $0x10] sm:$0xff]
        %v455 = vld [vmem:[%s451 + $0x18] sm:$0xff]
        %v456 = vld [vmem:[%s451 + $0x20] sm:$0xff]
        %v457 = vld [vmem:[%s451 + $0x28] sm:$0xff]
        %v458 = vld [vmem:[%s451 + $0x30] sm:$0xff]
        %v459 = vld [vmem:[%s451 + $0x38] sm:$0xff]
        %v460 = vld [vmem:[%s451 + $0x40] sm:$0xff]
        %v461 = vld [vmem:[%s451 + $0x48] sm:$0xff]
        %v462 = vld [vmem:[%s451 + $0x50] sm:$0xff]
        %v463 = vld [vmem:[%s451 + $0x58] sm:$0xff]
        %v464 = vld [vmem:[%s451 + $0x60] sm:$0xff]
        %v465 = vld [vmem:[%s451 + $0x68] sm:$0xff]
        %v466 = vld [vmem:[%s451 + $0x70] sm:$0xff]
        %v467 = vld [vmem:[%s451 + $0x78] sm:$0xff]
        %468 = vmatpush.msra.mxu0 %v467
        %469 = vmatpush.msra.mxu0 %v466
        %470 = vmatpush.msra.mxu0 %v465
        %471 = vmatpush.msra.mxu0 %v464
        %472 = vmatpush.msra.mxu0 %v463
        %473 = vmatpush.msra.mxu0 %v462
        %474 = vmatpush.msra.mxu0 %v461
        %475 = vmatpush.msra.mxu0 %v460
        %476 = vmatpush.msra.mxu0 %v459
        %477 = vmatpush.msra.mxu0 %v458
        %478 = vmatpush.msra.mxu0 %v457
        %479 = vmatpush.msra.mxu0 %v456
        %480 = vmatpush.msra.mxu0 %v455
        %481 = vmatpush.msra.mxu0 %v454
        %482 = vmatpush.msra.mxu0 %v453
        %483 = vmatpush.msra.mxu0 %v452
        %484 = vmatmul.f32.gmra.mxu0 %v449
        %v485 = vpop.f32.mrf.mxu0
        %v486 = vadd.f32 0.0, %v485
        %487 = vmatmul.f32.gmra.mxu0 %v450
        %v488 = vpop.f32.mrf.mxu0
        %v489 = vadd.f32 0.0, %v488
        %490 = vdwg.mxu0
        %v491 = vadd.f32 %v444, %v486
        %v492 = vadd.f32 %v447, %v489
        %v493 = vld [vmem:[#allocation8 + $0x1] sm:$0x1]
        %v494 = vperm.slane %v493, 0
        %v495 = vadd.f32 %v491, %v494
        %v496 = vadd.f32 %v492, %v494
        %v497 = vmax.f32 %v495, 0.0
        %v498 = vmax.f32 %v496, 0.0
        %v499 = vadd.f32 %v361, %v497
        %v500 = vadd.f32 %v362, %v498
        %501 = vst [vmem:[#allocation2 + $0x4] sm:$0xff] %v497
        %502 = vst [vmem:[#allocation2 + $0xc] sm:$0xff] %v498
        %v503 = vld [vmem:[#allocation2] sm:$0xff]
        %v504 = vld [vmem:[#allocation2 + $0x8] sm:$0xff]
        %s505 = scalar_lea.vmem [#allocation6], 768
        %v506 = vld [vmem:[%s505] sm:$0xff]
        %v507 = vld [vmem:[%s505 + $0x8] sm:$0xff]
        %v508 = vld [vmem:[%s505 + $0x10] sm:$0xff]
        %v509 = vld [vmem:[%s505 + $0x18] sm:$0xff]
        %v510 = vld [vmem:[%s505 + $0x20] sm:$0xff]
        %v511 = vld [vmem:[%s505 + $0x28] sm:$0xff]
        %v512 = vld [vmem:[%s505 + $0x30] sm:$0xff]
        %v513 = vld [vmem:[%s505 + $0x38] sm:$0xff]
        %v514 = vld [vmem:[%s505 + $0x40] sm:$0xff]
        %v515 = vld [vmem:[%s505 + $0x48] sm:$0xff]
        %v516 = vld [vmem:[%s505 + $0x50] sm:$0xff]
        %v517 = vld [vmem:[%s505 + $0x58] sm:$0xff]
        %v518 = vld [vmem:[%s505 + $0x60] sm:$0xff]
        %v519 = vld [vmem:[%s505 + $0x68] sm:$0xff]
        %v520 = vld [vmem:[%s505 + $0x70] sm:$0xff]
        %v521 = vld [vmem:[%s505 + $0x78] sm:$0xff]
        %v522 = vld [vmem:[#allocation2 + $0x4] sm:$0xff]
        %v523 = vld [vmem:[#allocation2 + $0xc] sm:$0xff]
        %s524 = scalar_lea.vmem [#allocation6], 896
        %v525 = vld [vmem:[%s524] sm:$0xff]
        %v526 = vld [vmem:[%s524 + $0x8] sm:$0xff]
        %v527 = vld [vmem:[%s524 + $0x10] sm:$0xff]
        %v528 = vld [vmem:[%s524 + $0x18] sm:$0xff]
        %v529 = vld [vmem:[%s524 + $0x20] sm:$0xff]
        %v530 = vld [vmem:[%s524 + $0x28] sm:$0xff]
        %v531 = vld [vmem:[%s524 + $0x30] sm:$0xff]
        %v532 = vld [vmem:[%s524 + $0x38] sm:$0xff]
        %v533 = vld [vmem:[%s524 + $0x40] sm:$0xff]
        %v534 = vld [vmem:[%s524 + $0x48] sm:$0xff]
        %v535 = vld [vmem:[%s524 + $0x50] sm:$0xff]
        %v536 = vld [vmem:[%s524 + $0x58] sm:$0xff]
        %v537 = vld [vmem:[%s524 + $0x60] sm:$0xff]
        %v538 = vld [vmem:[%s524 + $0x68] sm:$0xff]
        %v539 = vld [vmem:[%s524 + $0x70] sm:$0xff]
        %v540 = vld [vmem:[%s524 + $0x78] sm:$0xff]
        %541 = vmatpush.msra.mxu0 %v540
        %542 = vmatpush.msra.mxu0 %v539
        %543 = vmatpush.msra.mxu0 %v538
        %544 = vmatpush.msra.mxu0 %v537
        %545 = vmatpush.msra.mxu0 %v536
        %546 = vmatpush.msra.mxu0 %v535
        %547 = vmatpush.msra.mxu0 %v534
        %548 = vmatpush.msra.mxu0 %v533
        %549 = vmatpush.msra.mxu0 %v532
        %550 = vmatpush.msra.mxu0 %v531
        %551 = vmatpush.msra.mxu0 %v530
        %552 = vmatpush.msra.mxu0 %v529
        %553 = vmatpush.msra.mxu0 %v528
        %554 = vmatpush.msra.mxu0 %v527
        %555 = vmatpush.msra.mxu0 %v526
        %556 = vmatpush.msra.mxu0 %v525
        %557 = vmatmul.f32.gmra.mxu0 %v522
        %v558 = vpop.f32.mrf.mxu0
        %v559 = vadd.f32 0.0, %v558
        %560 = vmatmul.f32.gmra.mxu0 %v523
        %v561 = vpop.f32.mrf.mxu0
        %v562 = vadd.f32 0.0, %v561
        %563 = vdwg.mxu0
        %564 = vmatpush.msra.mxu0 %v521
        %565 = vmatpush.msra.mxu0 %v520
        %566 = vmatpush.msra.mxu0 %v519
        %567 = vmatpush.msra.mxu0 %v518
        %568 = vmatpush.msra.mxu0 %v517
        %569 = vmatpush.msra.mxu0 %v516
        %570 = vmatpush.msra.mxu0 %v515
        %571 = vmatpush.msra.mxu0 %v514
        %572 = vmatpush.msra.mxu0 %v513
        %573 = vmatpush.msra.mxu0 %v512
        %574 = vmatpush.msra.mxu0 %v511
        %575 = vmatpush.msra.mxu0 %v510
        %576 = vmatpush.msra.mxu0 %v509
        %577 = vmatpush.msra.mxu0 %v508
        %578 = vmatpush.msra.mxu0 %v507
        %579 = vmatpush.msra.mxu0 %v506
        %580 = vmatmul.f32.gmra.mxu0 %v503
        %v581 = vpop.f32.mrf.mxu0
        %v582 = vadd.f32 %v559, %v581
        %583 = vmatmul.f32.gmra.mxu0 %v504
        %v584 = vpop.f32.mrf.mxu0
        %v585 = vadd.f32 %v562, %v584
        %586 = vdwg.mxu0
        %v587 = vld [vmem:[#allocation2 + $0x8] sm:$0xff]
        %v588 = vld [vmem:[#allocation2 + $0x10] sm:$0xff]
        %s589 = scalar_lea.vmem [#allocation6], 1024
        %v590 = vld [vmem:[%s589] sm:$0xff]
        %v591 = vld [vmem:[%s589 + $0x8] sm:$0xff]
        %v592 = vld [vmem:[%s589 + $0x10] sm:$0xff]
        %v593 = vld [vmem:[%s589 + $0x18] sm:$0xff]
        %v594 = vld [vmem:[%s589 + $0x20] sm:$0xff]
        %v595 = vld [vmem:[%s589 + $0x28] sm:$0xff]
        %v596 = vld [vmem:[%s589 + $0x30] sm:$0xff]
        %v597 = vld [vmem:[%s589 + $0x38] sm:$0xff]
        %v598 = vld [vmem:[%s589 + $0x40] sm:$0xff]
        %v599 = vld [vmem:[%s589 + $0x48] sm:$0xff]
        %v600 = vld [vmem:[%s589 + $0x50] sm:$0xff]
        %v601 = vld [vmem:[%s589 + $0x58] sm:$0xff]
        %v602 = vld [vmem:[%s589 + $0x60] sm:$0xff]
        %v603 = vld [vmem:[%s589 + $0x68] sm:$0xff]
        %v604 = vld [vmem:[%s589 + $0x70] sm:$0xff]
        %v605 = vld [vmem:[%s589 + $0x78] sm:$0xff]
        %606 = vmatpush.msra.mxu0 %v605
        %607 = vmatpush.msra.mxu0 %v604
        %608 = vmatpush.msra.mxu0 %v603
        %609 = vmatpush.msra.mxu0 %v602
        %610 = vmatpush.msra.mxu0 %v601
        %611 = vmatpush.msra.mxu0 %v600
        %612 = vmatpush.msra.mxu0 %v599
        %613 = vmatpush.msra.mxu0 %v598
        %614 = vmatpush.msra.mxu0 %v597
        %615 = vmatpush.msra.mxu0 %v596
        %616 = vmatpush.msra.mxu0 %v595
        %617 = vmatpush.msra.mxu0 %v594
        %618 = vmatpush.msra.mxu0 %v593
        %619 = vmatpush.msra.mxu0 %v592
        %620 = vmatpush.msra.mxu0 %v591
        %621 = vmatpush.msra.mxu0 %v590
        %622 = vmatmul.f32.gmra.mxu0 %v587
        %v623 = vpop.f32.mrf.mxu0
        %v624 = vadd.f32 0.0, %v623
        %625 = vmatmul.f32.gmra.mxu0 %v588
        %v626 = vpop.f32.mrf.mxu0
        %v627 = vadd.f32 0.0, %v626
        %628 = vdwg.mxu0
        %v629 = vadd.f32 %v582, %v624
        %v630 = vadd.f32 %v585, %v627
        %v631 = vld [vmem:[#allocation8 + $0x2] sm:$0x1]
        %v632 = vperm.slane %v631, 0
        %v633 = vadd.f32 %v629, %v632
        %v634 = vadd.f32 %v630, %v632
        %v635 = vmax.f32 %v633, 0.0
        %v636 = vmax.f32 %v634, 0.0
        %v637 = vadd.f32 %v499, %v635
        %v638 = vadd.f32 %v500, %v636
        %639 = vst [vmem:[%s221] sm:$0xff] %v637
        %640 = vst [vmem:[%s221 + $0x8] sm:$0xff] %v638
        %s641 = sand.u32 %s97, 1
        %s642 = scalar_lea.sflag [#allocation5], %s641
        %s643 = sand.u32 %s97, 1
        %s644 = smul.addr %s643, 16
        %s645 = scalar_lea.vmem [#allocation9], %s644
        // Predicated region
        $region45: #{tpu_custom_call.1} parent=31 // pred_check
          %p646 = pneg %p107
        $region46: #{tpu_custom_call.1} parent=31 // pred_check_branch
          %648 = sbr.rel (%p646) target = $region48
        $region47: #{tpu_custom_call.1} parent=31 // pred_region
          %650 = vsyncadd %s642, 0
          %s651 = smul.addr %s21, 2
          %s652 = smul.addr %s651, 8
          %s653 = scalar_lea.hbm %s3, %s652
          %s654 = sshll.u32 %s645, 4
          %s655 = int_to_ptr.vmem [resolvable:$true] %s654
          %s656 = sshll.u32 %s653, 4
          %s657 = int_to_ptr.hbm [resolvable:$true] %s656
          %662 = dma.vmem_to_hbm [thread:$0]  %s655, 256, %s657, %s642, 128, 128, 8
        $region48: #{tpu_custom_call.1} parent=31 // pred_fallthru
          _
      $region32: #{tpu_custom_call.1} parent=5 // pred_fallthru
        _
      %p663 = scmp.le.s32.totalorder 2, %s16
      // Predicated region
      $region49: #{tpu_custom_call.1} parent=5 // pred_check
        %p664 = pneg %p663
      $region50: #{tpu_custom_call.1} parent=5 // pred_check_branch
        %666 = sbr.rel (%p664) target = $region52
      $region51: #{tpu_custom_call.1} parent=5 // pred_region
        %s667 = ssub.s32 %s16, 2
        // Predicated region
        $region53: #{tpu_custom_call.1} parent=51 // pred_check
          %p668 = pneg %p113
        $region54: #{tpu_custom_call.1} parent=51 // pred_check_branch
          %670 = sbr.rel (%p668) target = $region56
        $region55: #{tpu_custom_call.1} parent=51 // pred_region
          %s671 = sand.u32 %s98, 1
          %s672 = scalar_lea.sflag [#allocation5], %s671
          %s673 = sand.u32 %s98, 1
          %s674 = smul.addr %s673, 16
          %s675 = scalar_lea.vmem [#allocation9], %s674
          %677 = dma.done %s672, 256
        $region56: #{tpu_custom_call.1} parent=51 // pred_fallthru
          _
      $region52: #{tpu_custom_call.1} parent=5 // pred_fallthru
        _
    $region6: #{tpu_custom_call.1} parent=1 // loop_footer
      %s20 = sadd.s32 1, %s16
    $region7: #{tpu_custom_call.1} parent=1 // loop_footer_branch
      %15 = sbr.rel target = $region3
    $region8: #{tpu_custom_call.1} parent=1 // loop_exit
      _
    %678 = vsyncpa [#allocation4], 1
    %s679 = scalar_lea.sflag [#allocation4], 1
    %680 = vsyncpa %s679, 1
    %681 = vsyncpa [#allocation7], 1
    %682 = vsyncpa [#allocation5], 1
    %s683 = scalar_lea.sflag [#allocation5], 1
    %684 = vsyncpa %s683, 1

</llo_original>
